<compile_context>
chip_gen: v7x
topology: tpu7x:2x2x1
jax: 0.10.0
libtpu: 0.0.40
codegen_flags: <defaults>
</compile_context>

<pallas_src>
import jax
import jax.numpy as jnp
from jax.experimental import pallas as pl
from jax.experimental.pallas import tpu as pltpu


def _round_up(n: int, m: int) -> int:
    return ((n + m - 1) // m) * m


# --------------------------------------------------------------------------
# Kernel: one batch tile -> relu(x @ w1 + b1) @ w2 + b2
# --------------------------------------------------------------------------
def mlp_kernel(x_ref, w1_ref, b1_ref, w2_ref, b2_ref, out_ref):
    # Cast x to the MXU compute dtype (bf16) in-register, inside the kernel.
    x = x_ref[...].astype(w1_ref.dtype)
    # fc1: bf16 MXU matmul, f32 accumulate, f32 bias add (VPU), ReLU.
    h = jnp.dot(x, w1_ref[...], preferred_element_type=jnp.float32)
    h = jnp.maximum(h + b1_ref[...], 0.0)
    # fc2: re-quantize activations to bf16 for the MXU, f32 accumulate + bias.
    o = jnp.dot(h.astype(w2_ref.dtype), w2_ref[...],
                preferred_element_type=jnp.float32)
    o = o + b2_ref[...]
    out_ref[...] = o.astype(out_ref.dtype)


# --------------------------------------------------------------------------
# One-time parameter preparation (cache the result across forward calls).
# --------------------------------------------------------------------------
def prepare_params(w1, b1, w2, b2, compute_dtype=jnp.bfloat16):
    """Pad weights to lane-dense shapes and cast to the MXU compute dtype.

    w1: (In, H), b1: (H,), w2: (H, Out), b2: (Out,)  (in_features-major).
    Returns (w1_p, b1_p, w2_p, b2_p, Out).
    """
    In, H = w1.shape
    Out = w2.shape[1]

    # Lane-dense padding.  When the real dim exceeds 128, pad to a 256
    # multiple so v6e/v7x's 256-wide MXU columns are fully used.
    H_p = _round_up(H, 256) if H > 128 else _round_up(H, 128)
    Out_p = _round_up(Out, 256) if Out > 128 else _round_up(Out, 128)

    w1_p = jnp.zeros((In, H_p), compute_dtype).at[:, :H].set(
        w1.astype(compute_dtype))
    b1_p = jnp.zeros((1, H_p), jnp.float32).at[0, :H].set(
        b1.astype(jnp.float32))
    # Padded hidden columns stay exactly 0 through ReLU (b1 pad is 0), and
    # w2_p's padded rows are 0, so padding never contaminates real outputs.
    w2_p = jnp.zeros((H_p, Out_p), compute_dtype).at[:H, :Out].set(
        w2.astype(compute_dtype))
    b2_p = jnp.zeros((1, Out_p), jnp.float32).at[0, :Out].set(
        b2.astype(jnp.float32))
    return w1_p, b1_p, w2_p, b2_p, Out


def _choose_tb(B: int, block_b: int) -> int:
    """Batch tile: multiple of 16, >= 16, target block_b, >= 2 grid steps."""
    B16 = _round_up(B, 16)
    tb = max(16, min(_round_up(block_b, 16), B16))
    # Keep at least 2 grid steps when the batch allows it, so
    # dimension_semantics=("parallel",) can shard across v7x's 2 TensorCores.
    if B16 > 16:
        tb = min(tb, _round_up((B16 + 1) // 2, 16))
    return max(tb, 16)


# --------------------------------------------------------------------------
# Forward pass (expects prepared/padded params from prepare_params).
# --------------------------------------------------------------------------
def simple_surrogate_forward(x, w1_p, b1_p, w2_p, b2_p, out_features, *,
                             block_b=512, out_dtype=jnp.float32):
    """relu(x @ W1 + b1) @ W2 + b2 for x of shape (B, In)."""
    B, In = x.shape
    H_p = w1_p.shape[1]
    Out_p = w2_p.shape[1]

    TB = _choose_tb(B, block_b)
    grid = (pl.cdiv(B, TB),)  # partial last block handled by Pallas

    # Explicit VMEM budget: resident weights/biases + double-buffered x/out
    # tiles + f32 intermediate, 2x headroom, clamped to v7x's 64 MiB physical.
    c_item = jnp.dtype(w1_p.dtype).itemsize
    need = ((In * H_p + H_p * Out_p) * c_item            # resident weights
            + (H_p + Out_p) * 4                          # biases (f32)
            + 2 * TB * In * jnp.dtype(x.dtype).itemsize  # x double buffer
            + 2 * TB * Out_p * jnp.dtype(out_dtype).itemsize  # out double buffer
            + TB * H_p * 4                               # f32 hidden intermediate
            + TB * max(In, H_p) * c_item)                # bf16 staging
    vmem_limit = int(min(64 * 1024 * 1024, max(16 * 1024 * 1024, 2 * need)))

    out_p = pl.pallas_call(
        mlp_kernel,
        out_shape=jax.ShapeDtypeStruct((B, Out_p), out_dtype),
        grid=grid,
        in_specs=[
            # x streams tile-by-tile over the batch axis (no wrapper padding).
            pl.BlockSpec((TB, In), lambda i: (i, 0)),
            # Weights / biases: constant index_map -> resident in VMEM.
            pl.BlockSpec((In, H_p), lambda i: (0, 0)),
            pl.BlockSpec((1, H_p), lambda i: (0, 0)),
            pl.BlockSpec((H_p, Out_p), lambda i: (0, 0)),
            pl.BlockSpec((1, Out_p), lambda i: (0, 0)),
        ],
        out_specs=pl.BlockSpec((TB, Out_p), lambda i: (i, 0)),
        compiler_params=pltpu.CompilerParams(
            dimension_semantics=("parallel",),
            vmem_limit_bytes=vmem_limit,
        ),
    )(x, w1_p, b1_p, w2_p, b2_p)

    # Drop lane padding (downstream code that can consume the padded slab
    # should take out_p directly and skip this slice).
    return out_p[:, :out_features]


def init_params(key, input_size, hidden_size, output_size):
    # Deterministic init mimicking nn.Linear's uniform(-1/sqrt(fan_in), ...).
    k1, k2, k3, k4 = jax.random.split(key, 4)
    lim1 = 1.0 / jnp.sqrt(input_size)
    lim2 = 1.0 / jnp.sqrt(hidden_size)
    # Stored as (in_features, out_features) = W.T relative to PyTorch's (out, in).
    w1 = jax.random.uniform(k1, (input_size, hidden_size), jnp.float32, -lim1, lim1)
    b1 = jax.random.uniform(k2, (hidden_size,), jnp.float32, -lim1, lim1)
    w2 = jax.random.uniform(k3, (hidden_size, output_size), jnp.float32, -lim2, lim2)
    b2 = jax.random.uniform(k4, (output_size,), jnp.float32, -lim2, lim2)
    return w1, b1, w2, b2


if __name__ == "__main__":
    # Small shapes consistent with the module's (n_samples, n_features) input.
    # batch=24 -> TB=16, a 2-step batch grid with a partial last block.
    batch, input_size, hidden_size, output_size = 24, 32, 64, 16

    key = jax.random.PRNGKey(0)
    kx, kp = jax.random.split(key)
    x = jax.random.normal(kx, (batch, input_size), dtype=jnp.float32)
    w1, b1, w2, b2 = init_params(kp, input_size, hidden_size, output_size)

    # Prepare (pad + cast) the weights ONCE, outside the per-call path.
    w1_p, b1_p, w2_p, b2_p, out_feat = prepare_params(w1, b1, w2, b2)

    fwd = jax.jit(lambda xx: simple_surrogate_forward(
        xx, w1_p, b1_p, w2_p, b2_p, out_feat))

    out = jax.block_until_ready(fwd(x))
    assert out.shape == (batch, output_size)

    # 1) Tight check against a reference with identical numerics
    #    (bf16 MXU inputs, f32 accumulation, f32 bias adds).
    xb = x.astype(jnp.bfloat16)
    h_ref = jnp.maximum(
        jnp.dot(xb, w1.astype(jnp.bfloat16),
                preferred_element_type=jnp.float32) + b1, 0.0)
    ref_matched = jnp.dot(h_ref.astype(jnp.bfloat16), w2.astype(jnp.bfloat16),
                          preferred_element_type=jnp.float32) + b2
    assert jnp.allclose(out, ref_matched, atol=1e-4, rtol=1e-4)

    # 2) Semantic check against the pure-f32 fc1 -> relu -> fc2 reference
    #    (looser tolerance due to bf16 matmul inputs).
    ref_f32 = jnp.maximum(x @ w1 + b1, 0.0) @ w2 + b2
    assert jnp.allclose(out, ref_f32, atol=5e-2, rtol=5e-2)

    print("KERNEL_OK")
</pallas_src>

<mosaic_0001>
module attributes {stable_mosaic.version = 11 : i64} {
  func.func @mlp_kernel(%arg0: i32, %arg1: memref<16x32xf32, #tpu.memory_space<vmem>>, %arg2: memref<32x128xbf16, #tpu.memory_space<vmem>>, %arg3: memref<1x128xf32, #tpu.memory_space<vmem>>, %arg4: memref<128x128xbf16, #tpu.memory_space<vmem>>, %arg5: memref<1x128xf32, #tpu.memory_space<vmem>>, %arg6: memref<16x128xf32, #tpu.memory_space<vmem>>) attributes {dimension_semantics = [#tpu.dimension_semantics<parallel>], iteration_bounds = array<i64: 2>, scalar_prefetch = 0 : i64, scratch_operands = 0 : i64, tpu.core_type = #tpu.core_type<tc>, window_params = [{transform_indices = @transform_0, window_bounds = array<i64: 16, 32>}, {pipeline_mode = #tpu.pipeline_mode<synchronous>, transform_indices = @transform_1, window_bounds = array<i64: 32, 128>}, {pipeline_mode = #tpu.pipeline_mode<synchronous>, transform_indices = @transform_2, window_bounds = array<i64: 1, 128>}, {pipeline_mode = #tpu.pipeline_mode<synchronous>, transform_indices = @transform_3, window_bounds = array<i64: 128, 128>}, {pipeline_mode = #tpu.pipeline_mode<synchronous>, transform_indices = @transform_4, window_bounds = array<i64: 1, 128>}, {transform_indices = @transform_5, window_bounds = array<i64: 16, 128>}]} {
    %c0 = arith.constant 0 : index
    %c0_0 = arith.constant 0 : index
    %0 = vector.load %arg1[%c0, %c0_0] : memref<16x32xf32, #tpu.memory_space<vmem>>, vector<16x32xf32>
    %1 = arith.truncf %0 : vector<16x32xf32> to vector<16x32xbf16>
    %c0_1 = arith.constant 0 : index
    %c0_2 = arith.constant 0 : index
    %2 = vector.load %arg2[%c0_1, %c0_2] : memref<32x128xbf16, #tpu.memory_space<vmem>>, vector<32x128xbf16>
    %cst = arith.constant dense<0.000000e+00> : vector<16x128xf32>
    %3 = tpu.matmul %1, %2, %cst {dimension_numbers = #tpu.dot_dimension_numbers<[1], [0], [0], [1], [0, 0, 1, 1], [], []>} : vector<16x32xbf16>, vector<32x128xbf16>, vector<16x128xf32> -> vector<16x128xf32>
    %c0_3 = arith.constant 0 : index
    %c0_4 = arith.constant 0 : index
    %4 = vector.load %arg3[%c0_3, %c0_4] : memref<1x128xf32, #tpu.memory_space<vmem>>, vector<1x128xf32>
    %5 = vector.broadcast %4 : vector<1x128xf32> to vector<16x128xf32>
    %6 = arith.addf %3, %5 : vector<16x128xf32>
    %cst_5 = arith.constant 0.000000e+00 : f32
    %7 = vector.broadcast %cst_5 : f32 to vector<16x128xf32>
    %8 = arith.maximumf %6, %7 : vector<16x128xf32>
    %9 = arith.truncf %8 : vector<16x128xf32> to vector<16x128xbf16>
    %c0_6 = arith.constant 0 : index
    %c0_7 = arith.constant 0 : index
    %10 = vector.load %arg4[%c0_6, %c0_7] : memref<128x128xbf16, #tpu.memory_space<vmem>>, vector<128x128xbf16>
    %cst_8 = arith.constant dense<0.000000e+00> : vector<16x128xf32>
    %11 = tpu.matmul %9, %10, %cst_8 {dimension_numbers = #tpu.dot_dimension_numbers<[1], [0], [0], [1], [0, 0, 1, 1], [], []>} : vector<16x128xbf16>, vector<128x128xbf16>, vector<16x128xf32> -> vector<16x128xf32>
    %c0_9 = arith.constant 0 : index
    %c0_10 = arith.constant 0 : index
    %12 = vector.load %arg5[%c0_9, %c0_10] : memref<1x128xf32, #tpu.memory_space<vmem>>, vector<1x128xf32>
    %13 = vector.broadcast %12 : vector<1x128xf32> to vector<16x128xf32>
    %14 = arith.addf %11, %13 : vector<16x128xf32>
    %c0_11 = arith.constant 0 : index
    %c0_12 = arith.constant 0 : index
    %15 = vector.load %arg6[%c0_11, %c0_12] : memref<16x128xf32, #tpu.memory_space<vmem>>, vector<16x128xf32>
    tpu.vector_store %arg6[%c0_11, %c0_12], %14 {strides = array<i32>} : memref<16x128xf32, #tpu.memory_space<vmem>>, vector<16x128xf32>,
    return
  }
  func.func @transform_0(%arg0: i32) -> (i32, i32) {
    %c0_i32 = arith.constant 0 : i32
    %c0_i32_0 = arith.constant 0 : i32
    return %arg0, %c0_i32 : i32, i32
  }
  func.func @transform_1(%arg0: i32) -> (i32, i32) {
    %c0_i32 = arith.constant 0 : i32
    %c0_i32_0 = arith.constant 0 : i32
    %c0_i32_1 = arith.constant 0 : i32
    return %c0_i32, %c0_i32_0 : i32, i32
  }
  func.func @transform_2(%arg0: i32) -> (i32, i32) {
    %c0_i32 = arith.constant 0 : i32
    %c0_i32_0 = arith.constant 0 : i32
    %c0_i32_1 = arith.constant 0 : i32
    return %c0_i32, %c0_i32_0 : i32, i32
  }
  func.func @transform_3(%arg0: i32) -> (i32, i32) {
    %c0_i32 = arith.constant 0 : i32
    %c0_i32_0 = arith.constant 0 : i32
    %c0_i32_1 = arith.constant 0 : i32
    return %c0_i32, %c0_i32_0 : i32, i32
  }
  func.func @transform_4(%arg0: i32) -> (i32, i32) {
    %c0_i32 = arith.constant 0 : i32
    %c0_i32_0 = arith.constant 0 : i32
    %c0_i32_1 = arith.constant 0 : i32
    return %c0_i32, %c0_i32_0 : i32, i32
  }
  func.func @transform_5(%arg0: i32) -> (i32, i32) {
    %c0_i32 = arith.constant 0 : i32
    %c0_i32_0 = arith.constant 0 : i32
    return %arg0, %c0_i32 : i32, i32
  }
}

</mosaic_0001>

<llo_original>
// kernel: _lambda_.1
$region0: #{_lambda_.1}
  #allocation0 [shape = 'u32[]', space=smem, size = 0x4, offset = 0x4, fixed_abs, tag = 'smem constant byte address 0x4 - core index']
  #allocation1 [shape = 'u32[144,128]{1,0:T(1,128)}', space=vmem, size = 0x12000, scoped, tag = 'internal scratch']
  %s0 = inlined_call_operand.hbm [shape: f32[24,32], index: 0, kind: input, shape index: {}]
  %s1 = inlined_call_operand.vmem [shape: bf16[32,128], index: 1, kind: input, shape index: {}]
  %s2 = inlined_call_operand.vmem [shape: f32[1,128], index: 2, kind: input, shape index: {}]
  %s3 = inlined_call_operand.hbm [shape: bf16[128,128], index: 3, kind: input, shape index: {}]
  %s4 = inlined_call_operand.vmem [shape: f32[1,128], index: 4, kind: input, shape index: {}]
  %s5 = inlined_call_operand.vmem [shape: f32[24,128], index: 5, kind: output, shape index: {}]
  %s6 = sld [smem:[#allocation0]]
  $region109: #{_lambda_.1} parent=0
    _
  %s8 = ssub.s32 1, %s6
  %s9 = scalar_select 0, %s8, %s6
  $region1: #{_lambda_.1} parent=0
    #allocation2 [shape = 'u8[16384]{0}', space=vmem, size = 0x4000, scoped, tag = 'input window, operand 0']
    #allocation3 [shape = 's32[2]{0}', space=sflag, size = 0x8, scoped, tag = 'scoped memory for _lambda_.1']
    #allocation4 [shape = 'u8[32768]{0}', space=vmem, size = 0x8000, scoped, tag = 'input window, operand 3, single buffered']
    #allocation5 [shape = 's32[1]{0}', space=sflag, size = 0x4, scoped, tag = 'scoped memory for _lambda_.1']
    #allocation6 [shape = 'u8[16384]{0}', space=vmem, size = 0x4000, scoped, tag = 'output window, operand 0']
    %10 = vsyncpa [#allocation3], 0
    %s11 = scalar_lea.sflag [#allocation3], 1
    %12 = vsyncpa %s11, 0
    %13 = vsyncpa [#allocation5], 0
    loop: start=0, step=1, limit=4
    $region2: #{_lambda_.1} parent=1 // loop_pre_header
      _
    $region3: #{_lambda_.1} parent=1 // loop_header
      %s15 = sphi 0, %s19
      %p16 = scmp.ge.s32.totalorder %s15, 4
      %s25 = sphi 0, %s27
      %s28 = sphi 0, %s25
      %s29 = sphi 0, %s28
      %s45 = sphi 0, %s29
      %s49 = sphi 0, %s49
      %s51 = sphi 0, %s49
      %s52 = sphi 0, %s51
      %s66 = sphi 0, %s52
      %s70 = sphi 0, %s70
      %s72 = sphi 0, %s70
      %s73 = sphi 0, %s72
      %s87 = sphi 0, %s73
      %s91 = sphi 0, %s91
      %s93 = sphi 0, %s91
      %s94 = sphi 0, %s93
      %s108 = sphi 0, %s94
      %s112 = sphi 0, %s112
      %s114 = sphi 0, %s112
      %s115 = sphi 0, %s114
      %s129 = sphi 0, %s115
      %s135 = sphi 0, %s137
      %s138 = sphi 0, %s135
      %s139 = sphi 0, %s138
      %s155 = sphi 0, %s139
    $region4: #{_lambda_.1} parent=1 // loop_header_branch
      %18 = sbr.rel (%p16) target = $region8
    $region5: #{_lambda_.1} parent=1 // loop_body
      %s20 = ssub.s32 %s15, 1
      %s21 = ssub.s32 %s15, 2
      %s22 = sadd.s32 %s15, 1
      %s23 = ssub.s32 %s15, %s22
      %p24 = scmp.eq.s32.totalorder %s23, 0
      %s26 = sadd.s32 %s25, 1
      %s27 = scalar_select %p24, %s25, %s26
      %p30 = pneg %p24
      %p31 = scmp.eq.s32.totalorder %s15, 1
      %p32 = por %p30, %p31
      %p33 = scmp.ne.s32.totalorder %s25, %s28
      %p34 = scmp.eq.s32.totalorder %s15, 0
      %p35 = por %p33, %p34
      %p36 = scmp.ne.s32.totalorder %s25, %s28
      %p37 = scmp.eq.s32.totalorder %s20, 1
      %p38 = por %p36, %p37
      %p39 = scmp.ne.s32.totalorder %s28, %s29
      %p40 = scmp.eq.s32.totalorder %s20, 0
      %p41 = por %p39, %p40
      %p42 = scmp.ne.s32.totalorder %s28, %s29
      %p43 = scmp.eq.s32.totalorder %s21, 1
      %p44 = por %p42, %p43
      %p46 = scmp.ne.s32.totalorder %s29, %s45
      %p47 = scmp.eq.s32.totalorder %s21, 0
      %p48 = por %p46, %p47
      %s50 = sadd.s32 %s49, 1
      %p53 = scmp.eq.s32.totalorder %s15, 1
      %p54 = scmp.ne.s32.totalorder %s49, %s51
      %p55 = scmp.eq.s32.totalorder %s15, 0
      %p56 = por %p54, %p55
      %p57 = scmp.ne.s32.totalorder %s49, %s51
      %p58 = scmp.eq.s32.totalorder %s20, 1
      %p59 = por %p57, %p58
      %p60 = scmp.ne.s32.totalorder %s51, %s52
      %p61 = scmp.eq.s32.totalorder %s20, 0
      %p62 = por %p60, %p61
      %p63 = scmp.ne.s32.totalorder %s51, %s52
      %p64 = scmp.eq.s32.totalorder %s21, 1
      %p65 = por %p63, %p64
      %p67 = scmp.ne.s32.totalorder %s52, %s66
      %p68 = scmp.eq.s32.totalorder %s21, 0
      %p69 = por %p67, %p68
      %s71 = sadd.s32 %s70, 1
      %p74 = scmp.eq.s32.totalorder %s15, 1
      %p75 = scmp.ne.s32.totalorder %s70, %s72
      %p76 = scmp.eq.s32.totalorder %s15, 0
      %p77 = por %p75, %p76
      %p78 = scmp.ne.s32.totalorder %s70, %s72
      %p79 = scmp.eq.s32.totalorder %s20, 1
      %p80 = por %p78, %p79
      %p81 = scmp.ne.s32.totalorder %s72, %s73
      %p82 = scmp.eq.s32.totalorder %s20, 0
      %p83 = por %p81, %p82
      %p84 = scmp.ne.s32.totalorder %s72, %s73
      %p85 = scmp.eq.s32.totalorder %s21, 1
      %p86 = por %p84, %p85
      %p88 = scmp.ne.s32.totalorder %s73, %s87
      %p89 = scmp.eq.s32.totalorder %s21, 0
      %p90 = por %p88, %p89
      %s92 = sadd.s32 %s91, 1
      %p95 = scmp.eq.s32.totalorder %s15, 1
      %p96 = scmp.ne.s32.totalorder %s91, %s93
      %p97 = scmp.eq.s32.totalorder %s15, 0
      %p98 = por %p96, %p97
      %p99 = scmp.ne.s32.totalorder %s91, %s93
      %p100 = scmp.eq.s32.totalorder %s20, 1
      %p101 = por %p99, %p100
      %p102 = scmp.ne.s32.totalorder %s93, %s94
      %p103 = scmp.eq.s32.totalorder %s20, 0
      %p104 = por %p102, %p103
      %p105 = scmp.ne.s32.totalorder %s93, %s94
      %p106 = scmp.eq.s32.totalorder %s21, 1
      %p107 = por %p105, %p106
      %p109 = scmp.ne.s32.totalorder %s94, %s108
      %p110 = scmp.eq.s32.totalorder %s21, 0
      %p111 = por %p109, %p110
      %s113 = sadd.s32 %s112, 1
      %p116 = scmp.eq.s32.totalorder %s15, 1
      %p117 = scmp.ne.s32.totalorder %s112, %s114
      %p118 = scmp.eq.s32.totalorder %s15, 0
      %p119 = por %p117, %p118
      %p120 = scmp.ne.s32.totalorder %s112, %s114
      %p121 = scmp.eq.s32.totalorder %s20, 1
      %p122 = por %p120, %p121
      %p123 = scmp.ne.s32.totalorder %s114, %s115
      %p124 = scmp.eq.s32.totalorder %s20, 0
      %p125 = por %p123, %p124
      %p126 = scmp.ne.s32.totalorder %s114, %s115
      %p127 = scmp.eq.s32.totalorder %s21, 1
      %p128 = por %p126, %p127
      %p130 = scmp.ne.s32.totalorder %s115, %s129
      %p131 = scmp.eq.s32.totalorder %s21, 0
      %p132 = por %p130, %p131
      %s133 = ssub.s32 %s15, %s22
      %p134 = scmp.eq.s32.totalorder %s133, 0
      %s136 = sadd.s32 %s135, 1
      %s137 = scalar_select %p134, %s135, %s136
      %p140 = pneg %p134
      %p141 = scmp.eq.s32.totalorder %s15, 1
      %p142 = por %p140, %p141
      %p143 = scmp.ne.s32.totalorder %s135, %s138
      %p144 = scmp.eq.s32.totalorder %s15, 0
      %p145 = por %p143, %p144
      %p146 = scmp.ne.s32.totalorder %s135, %s138
      %p147 = scmp.eq.s32.totalorder %s20, 1
      %p148 = por %p146, %p147
      %p149 = scmp.ne.s32.totalorder %s138, %s139
      %p150 = scmp.eq.s32.totalorder %s20, 0
      %p151 = por %p149, %p150
      %p152 = scmp.ne.s32.totalorder %s138, %s139
      %p153 = scmp.eq.s32.totalorder %s21, 1
      %p154 = por %p152, %p153
      %p156 = scmp.ne.s32.totalorder %s139, %s155
      %p157 = scmp.eq.s32.totalorder %s21, 0
      %p158 = por %p156, %p157
      %p159 = scmp.le.s32.totalorder 1, %s15
      %p160 = scmp.lt.s32.totalorder %s15, 3
      %p161 = pnand %p159, %p160
      %p162 = pneg %p161
      // Predicated region
      $region9: #{_lambda_.1} parent=5 // pred_check
        _
      $region10: #{_lambda_.1} parent=5 // pred_check_branch
        %164 = sbr.rel (%p161) target = $region12
      $region11: #{_lambda_.1} parent=5 // pred_region
        %s165 = ssub.s32 %s15, 1
        // Predicated region
        $region13: #{_lambda_.1} parent=11 // pred_check
          %p166 = pneg %p62
        $region14: #{_lambda_.1} parent=11 // pred_check_branch
          %168 = sbr.rel (%p166) target = $region16
        $region15: #{_lambda_.1} parent=11 // pred_region
          _
        $region16: #{_lambda_.1} parent=11 // pred_fallthru
          _
        // Predicated region
        $region17: #{_lambda_.1} parent=11 // pred_check
          %p169 = pneg %p83
        $region18: #{_lambda_.1} parent=11 // pred_check_branch
          %171 = sbr.rel (%p169) target = $region20
        $region19: #{_lambda_.1} parent=11 // pred_region
          _
        $region20: #{_lambda_.1} parent=11 // pred_fallthru
          _
        // Predicated region
        $region21: #{_lambda_.1} parent=11 // pred_check
          %p172 = pneg %p104
        $region22: #{_lambda_.1} parent=11 // pred_check_branch
          %174 = sbr.rel (%p172) target = $region24
        $region23: #{_lambda_.1} parent=11 // pred_region
          %s176 = ssub.s32 1024, 1024
          %177 = vsyncadd [#allocation5], %s176
          %s178 = sshll.u32 [#allocation4], 4
          %s179 = int_to_ptr.vmem [resolvable:$true] %s178
          %184 = dma.hbm_to_vmem [thread:$0]  %s3, 1024, %s179, [#allocation5], 64, 64, 4
        $region24: #{_lambda_.1} parent=11 // pred_fallthru
          _
        // Predicated region
        $region25: #{_lambda_.1} parent=11 // pred_check
          %p185 = pneg %p125
        $region26: #{_lambda_.1} parent=11 // pred_check_branch
          %187 = sbr.rel (%p185) target = $region28
        $region27: #{_lambda_.1} parent=11 // pred_region
          _
        $region28: #{_lambda_.1} parent=11 // pred_fallthru
          _
      $region12: #{_lambda_.1} parent=5 // pred_fallthru
        _
      %p188 = scmp.lt.s32.totalorder %s15, 2
      // Predicated region
      $region29: #{_lambda_.1} parent=5 // pred_check
        %p189 = pneg %p188
      $region30: #{_lambda_.1} parent=5 // pred_check_branch
        %191 = sbr.rel (%p189) target = $region32
      $region31: #{_lambda_.1} parent=5 // pred_region
        // Predicated region
        $region33: #{_lambda_.1} parent=31 // pred_check
          %p192 = pneg %p35
        $region34: #{_lambda_.1} parent=31 // pred_check_branch
          %194 = sbr.rel (%p192) target = $region36
        $region35: #{_lambda_.1} parent=31 // pred_region
          %s195 = sand.u32 %s25, 1
          %s196 = scalar_lea.sflag [#allocation3], %s195
          %s197 = sand.u32 %s25, 1
          %s198 = smul.addr %s197, 16
          %s199 = scalar_lea.vmem [#allocation2], %s198
          %s200 = smul.u32 2, %s15
          %s201 = ssub.s32 3, %s200
          %p202 = scmp.lt.s32.totalorder %s201, 2
          %s203 = scalar_select %p202, %s201, 2
          %s204 = smul.u32 128, %s203
          %s206 = ssub.s32 256, %s204
          %207 = vsyncadd %s196, %s206
          %p208 = scmp.ne.s32.totalorder 0, %s204
          %s209 = smul.addr %s200, 128
          %s210 = scalar_lea.hbm %s0, %s209
          %s211 = smul.u32 8, %s203
          %s212 = sshll.u32 %s199, 4
          %s213 = int_to_ptr.vmem [resolvable:$true] %s212
          %s214 = sshll.u32 %s211, 4
          %218 = dma.hbm_to_vmem [thread:$0]  (%p208), %s210, %s214, %s213, %s196, 128, 128, 8
        $region36: #{_lambda_.1} parent=31 // pred_fallthru
          _
      $region32: #{_lambda_.1} parent=5 // pred_fallthru
        _
      %p219 = scmp.le.s32.totalorder 1, %s15
      %p220 = scmp.lt.s32.totalorder %s15, 3
      %p221 = pnand %p219, %p220
      %p222 = pneg %p221
      // Predicated region
      $region37: #{_lambda_.1} parent=5 // pred_check
        _
      $region38: #{_lambda_.1} parent=5 // pred_check_branch
        %224 = sbr.rel (%p221) target = $region40
      $region39: #{_lambda_.1} parent=5 // pred_region
        %s225 = ssub.s32 %s15, 1
        %s226 = sand.u32 %s28, 1
        %s227 = scalar_lea.sflag [#allocation3], %s226
        %s228 = sand.u32 %s28, 1
        %s229 = smul.addr %s228, 16
        %s230 = scalar_lea.vmem [#allocation2], %s229
        // Predicated region
        $region41: #{_lambda_.1} parent=39 // pred_check
          %p231 = pneg %p41
        $region42: #{_lambda_.1} parent=39 // pred_check_branch
          %233 = sbr.rel (%p231) target = $region44
        $region43: #{_lambda_.1} parent=39 // pred_region
          %234 = dma.done %s227, 256
        $region44: #{_lambda_.1} parent=39 // pred_fallthru
          _
        // Predicated region
        $region45: #{_lambda_.1} parent=39 // pred_check
          %p235 = pneg %p104
        $region46: #{_lambda_.1} parent=39 // pred_check_branch
          %237 = sbr.rel (%p235) target = $region48
        $region47: #{_lambda_.1} parent=39 // pred_region
          %238 = dma.done [#allocation5], 1024
        $region48: #{_lambda_.1} parent=39 // pred_fallthru
          _
        %s239 = sand.u32 %s28, 1
        %s240 = scalar_lea.sflag [#allocation3], %s239
        %s241 = sand.u32 %s28, 1
        %s242 = smul.addr %s241, 16
        %s243 = scalar_lea.vmem [#allocation2], %s242
        %p244 = pneg %p41
        %p245 = pneg %p38
        %p246 = pneg %p62
        %p247 = pneg %p59
        %p248 = pneg %p83
        %p249 = pneg %p80
        %p250 = pneg %p104
        %p251 = pneg %p101
        %p252 = pneg %p125
        %p253 = pneg %p122
        %p254 = pneg %p151
        %p255 = pneg %p148
        %s256 = sand.u32 %s138, 1
        %s257 = sand.u32 %s138, 1
        %s258 = smul.addr %s257, 16
        %s259 = scalar_lea.vmem [#allocation6], %s258
        %s260 = smul.u32 2, %s20
        %s261 = ssub.s32 3, %s260
        %p262 = scmp.lt.s32.totalorder %s261, 2
        %s263 = scalar_select %p262, %s261, 2
        %s264 = smul.u32 128, %s263
        %s265 = smul.u32 2, %s20
        %s266 = ssub.s32 3, %s265
        %p267 = scmp.lt.s32.totalorder %s266, 2
        %s268 = scalar_select %p267, %s266, 2
        %s269 = smul.u32 128, %s268
        %v271 = vld [vmem:[%s230] sm:$0xff]
        %v272 = vld [vmem:[%s230 + $0x8] sm:$0xff]
        %v273 = vpack.c.bf16 %v272, %v271
        %v274 = vld [vmem:[%s1] sm:$0xf]
        %v275 = vld [vmem:[%s1 + $0x4] sm:$0xf]
        %v276 = vld [vmem:[%s1 + $0x8] sm:$0xf]
        %v277 = vld [vmem:[%s1 + $0xc] sm:$0xf]
        %v278 = vld [vmem:[%s2] sm:$0x1]
        %v280 = vlaneseq
        %v281 = vshrl.u32 %v280, 7
        %v282 = vsub.s32 0, %v281
        %v283 = vrot.slane %v278, %v282
        %v289 = vunpack.c.l.b16 %v274
        %v290 = vunpack.c.l.b16 %v275
        %v291 = vunpack.c.l.b16 %v276
        %v292 = vunpack.c.l.b16 %v277
        %v293 = vpack.c.b16 %v290, %v289
        %v294 = vpack.c.b16 %v292, %v291
        %vm297 = vcmask 261120
        %v299 = vsel %vm297, %v273, 0
        %301 = vmatprep.subr.bf16.mxu0 0
        %302 = vmatpush1.bf16.msra.mxu0 %v293
        %303 = vmatprep.subr.bf16.mxu0 0
        %304 = vmatpush1.bf16.msra.mxu0 %v294
        %305 = vmatprep.subr.bf16.mxu0 0
        %306 = vmatpush1.bf16.msra.mxu0 0
        %307 = vmatprep.subr.bf16.mxu0 0
        %308 = vmatpush1.bf16.msra.mxu0 0
        %309 = vmatprep.subr.bf16.mxu0 0
        %310 = vmatpush1.bf16.msra.mxu0 0
        %311 = vmatprep.subr.bf16.mxu0 0
        %312 = vmatpush1.bf16.msra.mxu0 0
        %313 = vmatprep.subr.bf16.mxu0 0
        %314 = vmatpush1.bf16.msra.mxu0 0
        %315 = vmatprep.subr.bf16.mxu0 0
        %316 = vmatpush1.bf16.msra.mxu0 0
        %317 = vmatprep.subr.bf16.mxu0 0
        %318 = vmatpush1.bf16.msra.mxu0 0
        %319 = vmatprep.subr.bf16.mxu0 0
        %320 = vmatpush1.bf16.msra.mxu0 0
        %321 = vmatprep.subr.bf16.mxu0 0
        %322 = vmatpush1.bf16.msra.mxu0 0
        %323 = vmatprep.subr.bf16.mxu0 0
        %324 = vmatpush1.bf16.msra.mxu0 0
        %325 = vmatprep.subr.bf16.mxu0 0
        %326 = vmatpush1.bf16.msra.mxu0 0
        %327 = vmatprep.subr.bf16.mxu0 0
        %328 = vmatpush1.bf16.msra.mxu0 0
        %329 = vmatprep.subr.bf16.mxu0 0
        %330 = vmatpush1.bf16.msra.mxu0 0
        %331 = vmatprep.subr.bf16.mxu0 0
        %332 = vmatpush1.bf16.msra.mxu0 0
        %333 = vmatprep.mubr.bf16.mxu0 0
        %334 = vmatmul.mubr.bf16.gmra.mrb[0].mxu0 %v299
        %v335 = vpop.f32.mrb[0].mxu0
        %v336 = vadd.f32 %v283, %v335
        %v337 = vpop.f32.mrb[0].mxu0
        %v338 = vpop.f32.mrb[0].mxu0
        %v339 = vadd.f32 %v283, %v338
        %v340 = vpop.f32.mrb[0].mxu0
        %341 = vdwg.mxu0
        %v342 = vmax.f32 %v336, 0.0
        %v343 = vmax.f32 %v339, 0.0
        %v344 = vpack.c.bf16 %v343, %v342
        %v345 = vld [vmem:[#allocation4] sm:$0xf]
        %v346 = vld [vmem:[#allocation4 + $0x4] sm:$0xf]
        %v347 = vld [vmem:[#allocation4 + $0x8] sm:$0xf]
        %v348 = vld [vmem:[#allocation4 + $0xc] sm:$0xf]
        %v349 = vld [vmem:[#allocation4 + $0x10] sm:$0xf]
        %v350 = vld [vmem:[#allocation4 + $0x14] sm:$0xf]
        %v351 = vld [vmem:[#allocation4 + $0x18] sm:$0xf]
        %v352 = vld [vmem:[#allocation4 + $0x1c] sm:$0xf]
        %v353 = vld [vmem:[#allocation4 + $0x20] sm:$0xf]
        %v354 = vld [vmem:[#allocation4 + $0x24] sm:$0xf]
        %v355 = vld [vmem:[#allocation4 + $0x28] sm:$0xf]
        %v356 = vld [vmem:[#allocation4 + $0x2c] sm:$0xf]
        %v357 = vld [vmem:[#allocation4 + $0x30] sm:$0xf]
        %v358 = vld [vmem:[#allocation4 + $0x34] sm:$0xf]
        %v359 = vld [vmem:[#allocation4 + $0x38] sm:$0xf]
        %v360 = vld [vmem:[#allocation4 + $0x3c] sm:$0xf]
        %v361 = vld [vmem:[%s4] sm:$0x1]
        %v363 = vlaneseq
        %v364 = vshrl.u32 %v363, 7
        %v365 = vsub.s32 0, %v364
        %v366 = vrot.slane %v361, %v365
        %v384 = vunpack.c.l.b16 %v345
        %v385 = vunpack.c.l.b16 %v346
        %v386 = vunpack.c.l.b16 %v347
        %v387 = vunpack.c.l.b16 %v348
        %v388 = vunpack.c.l.b16 %v349
        %v389 = vunpack.c.l.b16 %v350
        %v390 = vunpack.c.l.b16 %v351
        %v391 = vunpack.c.l.b16 %v352
        %v392 = vunpack.c.l.b16 %v353
        %v393 = vunpack.c.l.b16 %v354
        %v394 = vunpack.c.l.b16 %v355
        %v395 = vunpack.c.l.b16 %v356
        %v396 = vunpack.c.l.b16 %v357
        %v397 = vunpack.c.l.b16 %v358
        %v398 = vunpack.c.l.b16 %v359
        %v399 = vunpack.c.l.b16 %v360
        %v400 = vpack.c.b16 %v385, %v384
        %v401 = vpack.c.b16 %v387, %v386
        %v402 = vpack.c.b16 %v389, %v388
        %v403 = vpack.c.b16 %v391, %v390
        %v404 = vpack.c.b16 %v393, %v392
        %v405 = vpack.c.b16 %v395, %v394
        %v406 = vpack.c.b16 %v397, %v396
        %v407 = vpack.c.b16 %v399, %v398
        %416 = vmatprep.subr.bf16.mxu0 0
        %417 = vmatpush1.bf16.msra.mxu0 %v400
        %418 = vmatprep.subr.bf16.mxu0 0
        %419 = vmatpush1.bf16.msra.mxu0 %v401
        %420 = vmatprep.subr.bf16.mxu0 0
        %421 = vmatpush1.bf16.msra.mxu0 %v402
        %422 = vmatprep.subr.bf16.mxu0 0
        %423 = vmatpush1.bf16.msra.mxu0 %v403
        %424 = vmatprep.subr.bf16.mxu0 0
        %425 = vmatpush1.bf16.msra.mxu0 %v404
        %426 = vmatprep.subr.bf16.mxu0 0
        %427 = vmatpush1.bf16.msra.mxu0 %v405
        %428 = vmatprep.subr.bf16.mxu0 0
        %429 = vmatpush1.bf16.msra.mxu0 %v406
        %430 = vmatprep.subr.bf16.mxu0 0
        %431 = vmatpush1.bf16.msra.mxu0 %v407
        %432 = vmatprep.subr.bf16.mxu0 0
        %433 = vmatpush1.bf16.msra.mxu0 0
        %434 = vmatprep.subr.bf16.mxu0 0
        %435 = vmatpush1.bf16.msra.mxu0 0
        %436 = vmatprep.subr.bf16.mxu0 0
        %437 = vmatpush1.bf16.msra.mxu0 0
        %438 = vmatprep.subr.bf16.mxu0 0
        %439 = vmatpush1.bf16.msra.mxu0 0
        %440 = vmatprep.subr.bf16.mxu0 0
        %441 = vmatpush1.bf16.msra.mxu0 0
        %442 = vmatprep.subr.bf16.mxu0 0
        %443 = vmatpush1.bf16.msra.mxu0 0
        %444 = vmatprep.subr.bf16.mxu0 0
        %445 = vmatpush1.bf16.msra.mxu0 0
        %446 = vmatprep.subr.bf16.mxu0 0
        %447 = vmatpush1.bf16.msra.mxu0 0
        %448 = vmatprep.mubr.bf16.mxu0 0
        %449 = vmatmul.mubr.bf16.gmra.mrb[0].mxu0 %v344
        %v450 = vpop.f32.mrb[0].mxu0
        %v451 = vadd.f32 %v366, %v450
        %v452 = vpop.f32.mrb[0].mxu0
        %v453 = vpop.f32.mrb[0].mxu0
        %v454 = vadd.f32 %v366, %v453
        %v455 = vpop.f32.mrb[0].mxu0
        %456 = vdwg.mxu0
        %457 = vst [vmem:[%s259] sm:$0xff] %v451
        %458 = vst [vmem:[%s259 + $0x8] sm:$0xff] %v454
        %s459 = sand.u32 %s138, 1
        %s460 = sand.u32 %s138, 1
        %s461 = smul.addr %s460, 16
        %s462 = scalar_lea.vmem [#allocation6], %s461
        // Predicated region
        $region49: #{_lambda_.1} parent=39 // pred_check
          %p463 = pneg %p148
        $region50: #{_lambda_.1} parent=39 // pred_check_branch
          %465 = sbr.rel (%p463) target = $region52
        $region51: #{_lambda_.1} parent=39 // pred_region
          %s466 = smul.u32 2, %s20
          %s467 = ssub.s32 3, %s466
          %p468 = scmp.lt.s32.totalorder %s467, 2
          %s469 = scalar_select %p468, %s467, 2
          %s470 = smul.u32 128, %s469
          %p471 = scmp.ne.s32.totalorder 0, %s470
          %s472 = smul.addr %s466, 8
          %s473 = scalar_lea.vmem %s5, %s472
          // Predicated region
          $region53: #{_lambda_.1} parent=51 // pred_check
            %p474 = pneg %p471
          $region54: #{_lambda_.1} parent=51 // pred_check_branch
            %476 = sbr.rel (%p474) target = $region56
          $region55: #{_lambda_.1} parent=51 // pred_region
            // Predicated region
            $region57: #{_lambda_.1} parent=55 // pred_check
              _
            $region58: #{_lambda_.1} parent=55 // pred_check_branch
              %478 = sbr.rel (0) target = $region60
            $region59: #{_lambda_.1} parent=55 // pred_region
              // Predicated region
              $region79: #{_lambda_.1} parent=59 // pred_check
                _
              $region80: #{_lambda_.1} parent=59 // pred_check_branch
                %529 = sbr.rel (0) target = $region82
              $region81: #{_lambda_.1} parent=59 // pred_region
                %s530 = sshrl.u32 %s469, 1
                // While loop
                $region83: #{_lambda_.1} parent=81 // loop_pre_header
                  _
                $region84: #{_lambda_.1} parent=81 // loop_header
                  %s532 = sphi 0, %s534
                  %p533 = scmp.ge.s32.totalorder %s532, %s530
                  %s537 = sphi 0, %s546
                  %s538 = sphi %s462, %s549
                  %s539 = sphi %s473, %s550
                $region85: #{_lambda_.1} parent=81 // loop_header_branch
                  %536 = sbr.rel (%p533) target = $region89
                $region86: #{_lambda_.1} parent=81 // loop_body
                  %v540 = vld [vmem:[%s538] sm:$0xff]
                  %541 = vst [vmem:[%s539] sm:$0xff] %v540
                  %v542 = vld [vmem:[%s538 + $0x8] sm:$0xff]
                  %543 = vst [vmem:[%s539 + $0x8] sm:$0xff] %v542
                  %s544 = sadd.s32 1, %s537
                  %p545 = scmp.ge.s32.totalorder %s544, %s530
                  %s546 = scalar_select %p545, 0, %s544
                  %s547 = smul.u32 %s546, 16
                  %s548 = smul.u32 %s546, 16
                  %s549 = scalar_lea.vmem %s462, %s547 [#allocation6]
                  %s550 = scalar_lea.vmem %s473, %s548
                $region87: #{_lambda_.1} parent=81 // loop_footer
                  %s534 = sadd.s32 %s532, 1
                $region88: #{_lambda_.1} parent=81 // loop_footer_branch
                  %531 = sbr.rel target = $region84
                $region89: #{_lambda_.1} parent=81 // loop_exit
                  _
                %s551 = sshrl.u32 %s469, 1
                %s552 = sand.u32 %s469, 1
                %s553 = smul.u32 %s551, 2
                %s554 = smul.u32 8, %s553
                %s555 = scalar_lea.vmem %s462, %s554 [#allocation6]
                %s556 = smul.u32 8, %s553
                %s557 = scalar_lea.vmem %s473, %s556
                // While loop
                $region90: #{_lambda_.1} parent=81 // loop_pre_header
                  _
                $region91: #{_lambda_.1} parent=81 // loop_header
                  %s559 = sphi 0, %s561
                  %p560 = scmp.ge.s32.totalorder %s559, %s552
                  %s564 = sphi 0, %s571
                  %s565 = sphi %s555, %s574
                  %s566 = sphi %s557, %s575
                $region92: #{_lambda_.1} parent=81 // loop_header_branch
                  %563 = sbr.rel (%p560) target = $region96
                $region93: #{_lambda_.1} parent=81 // loop_body
                  %v567 = vld [vmem:[%s565] sm:$0xff]
                  %568 = vst [vmem:[%s566] sm:$0xff] %v567
                  %s569 = sadd.s32 1, %s564
                  %p570 = scmp.ge.s32.totalorder %s569, %s552
                  %s571 = scalar_select %p570, 0, %s569
                  %s572 = smul.u32 %s571, 8
                  %s573 = smul.u32 %s571, 8
                  %s574 = scalar_lea.vmem %s555, %s572 [#allocation6]
                  %s575 = scalar_lea.vmem %s557, %s573
                $region94: #{_lambda_.1} parent=81 // loop_footer
                  %s561 = sadd.s32 %s559, 1
                $region95: #{_lambda_.1} parent=81 // loop_footer_branch
                  %558 = sbr.rel target = $region91
                $region96: #{_lambda_.1} parent=81 // loop_exit
                  _
              $region82: #{_lambda_.1} parent=59 // pred_fallthru
                _
              // Predicated region
              $region97: #{_lambda_.1} parent=59 // pred_check
                _
              $region98: #{_lambda_.1} parent=59 // pred_check_branch
                %577 = sbr.rel target = $region100
              $region99: #{_lambda_.1} parent=59 // pred_region
                _
              $region100: #{_lambda_.1} parent=59 // pred_fallthru
                _
            $region60: #{_lambda_.1} parent=55 // pred_fallthru
              _
            // Predicated region
            $region61: #{_lambda_.1} parent=55 // pred_check
              _
            $region62: #{_lambda_.1} parent=55 // pred_check_branch
              %480 = sbr.rel target = $region64
            $region63: #{_lambda_.1} parent=55 // pred_region
              %s482 = sshrl.u32 %s469, 1
              // While loop
              $region65: #{_lambda_.1} parent=63 // loop_pre_header
                _
              $region66: #{_lambda_.1} parent=63 // loop_header
                %s484 = sphi 0, %s486
                %p485 = scmp.ge.s32.totalorder %s484, %s482
                %s489 = sphi 0, %s498
                %s490 = sphi %s462, %s501
                %s491 = sphi %s473, %s502
              $region67: #{_lambda_.1} parent=63 // loop_header_branch
                %488 = sbr.rel (%p485) target = $region71
              $region68: #{_lambda_.1} parent=63 // loop_body
                %v492 = vld [vmem:[%s490] sm:$0xff]
                %493 = vst [vmem:[%s491] sm:$0xff] %v492
                %v494 = vld [vmem:[%s490 + $0x8] sm:$0xff]
                %495 = vst [vmem:[%s491 + $0x8] sm:$0xff] %v494
                %s496 = sadd.s32 1, %s489
                %p497 = scmp.ge.s32.totalorder %s496, %s482
                %s498 = scalar_select %p497, 0, %s496
                %s499 = smul.u32 %s498, 16
                %s500 = smul.u32 %s498, 16
                %s501 = scalar_lea.vmem %s462, %s499 [#allocation6]
                %s502 = scalar_lea.vmem %s473, %s500
              $region69: #{_lambda_.1} parent=63 // loop_footer
                %s486 = sadd.s32 %s484, 1
              $region70: #{_lambda_.1} parent=63 // loop_footer_branch
                %483 = sbr.rel target = $region66
              $region71: #{_lambda_.1} parent=63 // loop_exit
                _
              %s503 = sshrl.u32 %s469, 1
              %s504 = sand.u32 %s469, 1
              %s505 = smul.u32 %s503, 2
              %s506 = smul.u32 8, %s505
              %s507 = scalar_lea.vmem %s462, %s506 [#allocation6]
              %s508 = smul.u32 8, %s505
              %s509 = scalar_lea.vmem %s473, %s508
              // While loop
              $region72: #{_lambda_.1} parent=63 // loop_pre_header
                _
              $region73: #{_lambda_.1} parent=63 // loop_header
                %s511 = sphi 0, %s513
                %p512 = scmp.ge.s32.totalorder %s511, %s504
                %s516 = sphi 0, %s523
                %s517 = sphi %s507, %s526
                %s518 = sphi %s509, %s527
              $region74: #{_lambda_.1} parent=63 // loop_header_branch
                %515 = sbr.rel (%p512) target = $region78
              $region75: #{_lambda_.1} parent=63 // loop_body
                %v519 = vld [vmem:[%s517] sm:$0xff]
                %520 = vst [vmem:[%s518] sm:$0xff] %v519
                %s521 = sadd.s32 1, %s516
                %p522 = scmp.ge.s32.totalorder %s521, %s504
                %s523 = scalar_select %p522, 0, %s521
                %s524 = smul.u32 %s523, 8
                %s525 = smul.u32 %s523, 8
                %s526 = scalar_lea.vmem %s507, %s524 [#allocation6]
                %s527 = scalar_lea.vmem %s509, %s525
              $region76: #{_lambda_.1} parent=63 // loop_footer
                %s513 = sadd.s32 %s511, 1
              $region77: #{_lambda_.1} parent=63 // loop_footer_branch
                %510 = sbr.rel target = $region73
              $region78: #{_lambda_.1} parent=63 // loop_exit
                _
            $region64: #{_lambda_.1} parent=55 // pred_fallthru
              _
          $region56: #{_lambda_.1} parent=51 // pred_fallthru
            _
          %578 = vnop
        $region52: #{_lambda_.1} parent=39 // pred_fallthru
          _
      $region40: #{_lambda_.1} parent=5 // pred_fallthru
        _
      %p579 = scmp.le.s32.totalorder 2, %s15
      // Predicated region
      $region101: #{_lambda_.1} parent=5 // pred_check
        %p580 = pneg %p579
      $region102: #{_lambda_.1} parent=5 // pred_check_branch
        %582 = sbr.rel (%p580) target = $region104
      $region103: #{_lambda_.1} parent=5 // pred_region
        %s583 = ssub.s32 %s15, 2
        // Predicated region
        $region105: #{_lambda_.1} parent=103 // pred_check
          %p584 = pneg %p154
        $region106: #{_lambda_.1} parent=103 // pred_check_branch
          %586 = sbr.rel (%p584) target = $region108
        $region107: #{_lambda_.1} parent=103 // pred_region
          %s587 = sand.u32 %s139, 1
          %s588 = sand.u32 %s139, 1
          %s589 = smul.addr %s588, 16
          %s590 = scalar_lea.vmem [#allocation6], %s589
        $region108: #{_lambda_.1} parent=103 // pred_fallthru
          _
      $region104: #{_lambda_.1} parent=5 // pred_fallthru
        _
    $region6: #{_lambda_.1} parent=1 // loop_footer
      %s19 = sadd.s32 1, %s15
    $region7: #{_lambda_.1} parent=1 // loop_footer_branch
      %14 = sbr.rel target = $region3
    $region8: #{_lambda_.1} parent=1 // loop_exit
      _
    %591 = vsyncpa [#allocation3], 1
    %s592 = scalar_lea.sflag [#allocation3], 1
    %593 = vsyncpa %s592, 1
    %594 = vsyncpa [#allocation5], 1

</llo_original>
